<compile_context>
chip_gen: v7x
topology: tpu7x:2x2x1
jax: 0.10.0
libtpu: 0.0.40
codegen_flags: <defaults>
</compile_context>

<pallas_src>
import jax
import jax.numpy as jnp
from jax.experimental import pallas as pl
from jax.experimental.pallas import tpu as pltpu

IN_FEATURES = 64
OUT_FEATURES = 128


def linear_relu_kernel(x_ref, w_ref, b_ref, o_ref):
    # x_ref: (bm, IN), w_ref: (IN, OUT), b_ref: (1, OUT), o_ref: (bm, OUT)
    acc = jnp.dot(x_ref[...], w_ref[...], preferred_element_type=jnp.float32)
    acc = acc + b_ref[...]                      # broadcast (1, OUT) over rows
    o_ref[...] = jnp.maximum(acc, 0.0).astype(o_ref.dtype)


def _linear_relu_single_block(x, w, b):
    """Grid-less path for small batches: whole problem in VMEM, one kernel body."""
    B, IN = x.shape
    IN2, OUT = w.shape
    assert IN == IN2 and b.shape == (1, OUT)
    return pl.pallas_call(
        linear_relu_kernel,
        out_shape=jax.ShapeDtypeStruct((B, OUT), x.dtype),
        in_specs=[
            pl.BlockSpec(memory_space=pltpu.MemorySpace.VMEM),
            pl.BlockSpec(memory_space=pltpu.MemorySpace.VMEM),
            pl.BlockSpec(memory_space=pltpu.MemorySpace.VMEM),
        ],
        out_specs=pl.BlockSpec(memory_space=pltpu.MemorySpace.VMEM),
    )(x, w, b)


def _linear_relu_batched(x, w, b, *, bm=256):
    """Batch-tiled path for large B: 'parallel' batch grid, w/b VMEM-resident."""
    B, IN = x.shape
    IN2, OUT = w.shape
    assert IN == IN2 and b.shape == (1, OUT)
    pad = (-B) % bm
    if pad:
        x = jnp.pad(x, ((0, pad), (0, 0)))
    Bp = B + pad
    out = pl.pallas_call(
        linear_relu_kernel,
        out_shape=jax.ShapeDtypeStruct((Bp, OUT), x.dtype),
        grid_spec=pltpu.PrefetchScalarGridSpec(
            num_scalar_prefetch=0,
            grid=(Bp // bm,),
            in_specs=[
                pl.BlockSpec((bm, IN), lambda i: (i, 0)),
                pl.BlockSpec((IN, OUT), lambda i: (0, 0)),   # resident across grid
                pl.BlockSpec((1, OUT), lambda i: (0, 0)),    # resident across grid
            ],
            out_specs=pl.BlockSpec((bm, OUT), lambda i: (i, 0)),
        ),
        compiler_params=pltpu.CompilerParams(
            dimension_semantics=("parallel",),
        ),
    )(x, w, b)
    return out[:B] if pad else out


def linear_relu(x, w, b, *, bm=256):
    # TODO(synk): for v6e/v7x at large B, casting x/w to bfloat16 (f32 accumulate)
    # doubles MXU throughput; kept f32 here to match the f32 reference exactly.
    if x.shape[0] <= bm:
        return _linear_relu_single_block(x, w, b)
    return _linear_relu_batched(x, w, b, bm=bm)


if __name__ == "__main__":
    key = jax.random.PRNGKey(0)
    kx, kw, kb, kx2 = jax.random.split(key, 4)

    # Input matches the PyTorch script: x1 = torch.randn(1, 64)
    x1 = jax.random.normal(kx, (1, IN_FEATURES), dtype=jnp.float32)

    # Deterministic parameter init mimicking nn.Linear(64, 128):
    # uniform(-1/sqrt(in), 1/sqrt(in)) for weight and bias.
    bound = 1.0 / jnp.sqrt(jnp.float32(IN_FEATURES))
    # PyTorch weight is (OUT, IN); kept transposed as (IN, OUT) for the kernel.
    w = jax.random.uniform(
        kw, (IN_FEATURES, OUT_FEATURES), dtype=jnp.float32,
        minval=-bound, maxval=bound)
    b = jax.random.uniform(
        kb, (1, OUT_FEATURES), dtype=jnp.float32,
        minval=-bound, maxval=bound)

    # --- spec shape (B=1): grid-less single-block path ---
    out = linear_relu(x1, w, b)
    jax.block_until_ready(out)
    ref = jnp.maximum(x1 @ w + b, 0.0)
    assert out.shape == (1, OUT_FEATURES)
    assert jnp.allclose(out, ref, atol=1e-5, rtol=1e-5)

    # --- larger batch: exercises the tiled "parallel" path ---
    xb = jax.random.normal(kx2, (512, IN_FEATURES), dtype=jnp.float32)
    outb = linear_relu(xb, w, b)
    jax.block_until_ready(outb)
    refb = jnp.maximum(xb @ w + b, 0.0)
    assert outb.shape == (512, OUT_FEATURES)
    assert jnp.allclose(outb, refb, atol=1e-5, rtol=1e-5)

    print("KERNEL_OK")
</pallas_src>

<mosaic_0001>
module attributes {stable_mosaic.version = 11 : i64} {
  func.func @linear_relu_kernel(%arg0: memref<1x64xf32, #tpu.memory_space<vmem>>, %arg1: memref<64x128xf32, #tpu.memory_space<vmem>>, %arg2: memref<1x128xf32, #tpu.memory_space<vmem>>, %arg3: memref<1x128xf32, #tpu.memory_space<vmem>>) attributes {dimension_semantics = [], scalar_prefetch = 0 : i64, scratch_operands = 0 : i64, tpu.core_type = #tpu.core_type<tc>} {
    %c0 = arith.constant 0 : index
    %c0_0 = arith.constant 0 : index
    %0 = vector.load %arg0[%c0, %c0_0] : memref<1x64xf32, #tpu.memory_space<vmem>>, vector<1x64xf32>
    %c0_1 = arith.constant 0 : index
    %c0_2 = arith.constant 0 : index
    %1 = vector.load %arg1[%c0_1, %c0_2] : memref<64x128xf32, #tpu.memory_space<vmem>>, vector<64x128xf32>
    %cst = arith.constant dense<0.000000e+00> : vector<1x128xf32>
    %2 = tpu.matmul %0, %1, %cst {dimension_numbers = #tpu.dot_dimension_numbers<[1], [0], [0], [1], [0, 0, 1, 1], [], []>} : vector<1x64xf32>, vector<64x128xf32>, vector<1x128xf32> -> vector<1x128xf32>
    %c0_3 = arith.constant 0 : index
    %c0_4 = arith.constant 0 : index
    %3 = vector.load %arg2[%c0_3, %c0_4] : memref<1x128xf32, #tpu.memory_space<vmem>>, vector<1x128xf32>
    %4 = arith.addf %2, %3 : vector<1x128xf32>
    %cst_5 = arith.constant 0.000000e+00 : f32
    %5 = vector.broadcast %cst_5 : f32 to vector<1x128xf32>
    %6 = arith.maximumf %4, %5 : vector<1x128xf32>
    %c0_6 = arith.constant 0 : index
    %c0_7 = arith.constant 0 : index
    %7 = vector.load %arg3[%c0_6, %c0_7] : memref<1x128xf32, #tpu.memory_space<vmem>>, vector<1x128xf32>
    tpu.vector_store %arg3[%c0_6, %c0_7], %6 {strides = array<i32>} : memref<1x128xf32, #tpu.memory_space<vmem>>, vector<1x128xf32>,
    return
  }
}

</mosaic_0001>

<llo_original>
// kernel: tpu_custom_call.1
$region0: #{tpu_custom_call.1}
  #allocation0 [shape = 'u32[]', space=smem, size = 0x4, offset = 0x4, fixed_abs, tag = 'smem constant byte address 0x4 - core index']
  #allocation1 [shape = 'u32[144,128]{1,0:T(1,128)}', space=vmem, size = 0x12000, scoped, tag = 'internal scratch']
  %s0 = inlined_call_operand.hbm [shape: f32[1,64], index: 0, kind: input, shape index: {}]
  %s1 = inlined_call_operand.hbm [shape: f32[64,128], index: 1, kind: input, shape index: {}]
  %s2 = inlined_call_operand.vmem [shape: f32[1,128], index: 2, kind: input, shape index: {}]
  %s3 = inlined_call_operand.hbm [shape: f32[1,128], index: 3, kind: output, shape index: {}]
  %s4 = sld [smem:[#allocation0]]
  $region30: #{tpu_custom_call.1} parent=0
    _
  %s6 = ssub.s32 1, %s4
  %s7 = scalar_select 0, %s6, %s4
  $region1: #{tpu_custom_call.1} parent=0
    #allocation2 [shape = 'u8[512]{0}', space=vmem, size = 0x400, scoped, tag = 'input window, operand 0, single buffered']
    #allocation3 [shape = 's32[1]{0}', space=sflag, size = 0x4, scoped, tag = 'scoped memory for tpu_custom_call.1']
    #allocation4 [shape = 's32[1]{0}', space=sflag, size = 0x4, scoped, tag = 'scoped memory for tpu_custom_call.1']
    #allocation5 [shape = 'u8[32768]{0}', space=vmem, size = 0x8000, scoped, tag = 'input window, operand 1, single buffered']
    #allocation6 [shape = 's32[1]{0}', space=sflag, size = 0x4, scoped, tag = 'scoped memory for tpu_custom_call.1']
    #allocation7 [shape = 'u8[512]{0}', space=vmem, size = 0x400, scoped, tag = 'output window, operand 0, single buffered']
    %8 = vsyncpa [#allocation3], 0
    %9 = vsyncpa [#allocation6], 0
    %10 = vsyncpa [#allocation4], 0
    // Predicated region
    $region2: #{tpu_custom_call.1} parent=1 // pred_check
      _
    $region3: #{tpu_custom_call.1} parent=1 // pred_check_branch
      %12 = sbr.rel (0) target = $region5
    $region4: #{tpu_custom_call.1} parent=1 // pred_region
      %s14 = ssub.s32 16, 16
      %15 = vsyncadd [#allocation3], %s14
      %s17 = sshll.u32 [#allocation2], 4
      %s18 = int_to_ptr.vmem [resolvable:$true] %s17
      %20 = dma.hbm_to_vmem [thread:$0]  %s0, 16, %s18, [#allocation3]
    $region5: #{tpu_custom_call.1} parent=1 // pred_fallthru
      _
    // Predicated region
    $region6: #{tpu_custom_call.1} parent=1 // pred_check
      _
    $region7: #{tpu_custom_call.1} parent=1 // pred_check_branch
      %22 = sbr.rel (0) target = $region9
    $region8: #{tpu_custom_call.1} parent=1 // pred_region
      %s24 = ssub.s32 1024, 1024
      %25 = vsyncadd [#allocation6], %s24
      %s26 = sshll.u32 [#allocation5], 4
      %s27 = int_to_ptr.vmem [resolvable:$true] %s26
      %32 = dma.hbm_to_vmem [thread:$0]  %s1, 1024, %s27, [#allocation6], 128, 128, 8
    $region9: #{tpu_custom_call.1} parent=1 // pred_fallthru
      _
    // Predicated region
    $region10: #{tpu_custom_call.1} parent=1 // pred_check
      _
    $region11: #{tpu_custom_call.1} parent=1 // pred_check_branch
      %34 = sbr.rel (0) target = $region13
    $region12: #{tpu_custom_call.1} parent=1 // pred_region
      _
    $region13: #{tpu_custom_call.1} parent=1 // pred_fallthru
      _
    // Predicated region
    $region14: #{tpu_custom_call.1} parent=1 // pred_check
      _
    $region15: #{tpu_custom_call.1} parent=1 // pred_check_branch
      %36 = sbr.rel (0) target = $region17
    $region16: #{tpu_custom_call.1} parent=1 // pred_region
      %37 = dma.done [#allocation3], 16
    $region17: #{tpu_custom_call.1} parent=1 // pred_fallthru
      _
    // Predicated region
    $region18: #{tpu_custom_call.1} parent=1 // pred_check
      _
    $region19: #{tpu_custom_call.1} parent=1 // pred_check_branch
      %39 = sbr.rel (0) target = $region21
    $region20: #{tpu_custom_call.1} parent=1 // pred_region
      %40 = dma.done [#allocation6], 1024
    $region21: #{tpu_custom_call.1} parent=1 // pred_fallthru
      _
    %v41 = vld [vmem:[#allocation2] sm:$0x1]
    %v42 = vld [vmem:[#allocation5] sm:$0xff]
    %v43 = vld [vmem:[#allocation5 + $0x8] sm:$0xff]
    %v44 = vld [vmem:[#allocation5 + $0x10] sm:$0xff]
    %v45 = vld [vmem:[#allocation5 + $0x18] sm:$0xff]
    %v46 = vld [vmem:[#allocation5 + $0x20] sm:$0xff]
    %v47 = vld [vmem:[#allocation5 + $0x28] sm:$0xff]
    %v48 = vld [vmem:[#allocation5 + $0x30] sm:$0xff]
    %v49 = vld [vmem:[#allocation5 + $0x38] sm:$0xff]
    %v50 = vld [vmem:[%s2] sm:$0x1]
    %vm51 = vcmask 523264
    %v53 = vsel %vm51, %v41, 0
    %55 = vmatprep.subr.mxu0 0.0
    %56 = vmatpush1.msra.mxu0 %v42
    %57 = vmatprep.subr.mxu0 0.0
    %58 = vmatpush1.msra.mxu0 %v43
    %59 = vmatprep.subr.mxu0 0.0
    %60 = vmatpush1.msra.mxu0 %v44
    %61 = vmatprep.subr.mxu0 0.0
    %62 = vmatpush1.msra.mxu0 %v45
    %63 = vmatprep.subr.mxu0 0.0
    %64 = vmatpush1.msra.mxu0 %v46
    %65 = vmatprep.subr.mxu0 0.0
    %66 = vmatpush1.msra.mxu0 %v47
    %67 = vmatprep.subr.mxu0 0.0
    %68 = vmatpush1.msra.mxu0 %v48
    %69 = vmatprep.subr.mxu0 0.0
    %70 = vmatpush1.msra.mxu0 %v49
    %71 = vmatprep.subr.mxu0 0.0
    %72 = vmatpush1.msra.mxu0 0.0
    %73 = vmatprep.subr.mxu0 0.0
    %74 = vmatpush1.msra.mxu0 0.0
    %75 = vmatprep.subr.mxu0 0.0
    %76 = vmatpush1.msra.mxu0 0.0
    %77 = vmatprep.subr.mxu0 0.0
    %78 = vmatpush1.msra.mxu0 0.0
    %79 = vmatprep.subr.mxu0 0.0
    %80 = vmatpush1.msra.mxu0 0.0
    %81 = vmatprep.subr.mxu0 0.0
    %82 = vmatpush1.msra.mxu0 0.0
    %83 = vmatprep.subr.mxu0 0.0
    %84 = vmatpush1.msra.mxu0 0.0
    %85 = vmatprep.subr.mxu0 0.0
    %86 = vmatpush1.msra.mxu0 0.0
    %87 = vmatprep.subr.mxu0 0.0
    %88 = vmatpush1.msra.mxu0 0.0
    %89 = vmatprep.subr.mxu0 0.0
    %90 = vmatpush1.msra.mxu0 0.0
    %91 = vmatprep.subr.mxu0 0.0
    %92 = vmatpush1.msra.mxu0 0.0
    %93 = vmatprep.subr.mxu0 0.0
    %94 = vmatpush1.msra.mxu0 0.0
    %95 = vmatprep.subr.mxu0 0.0
    %96 = vmatpush1.msra.mxu0 0.0
    %97 = vmatprep.subr.mxu0 0.0
    %98 = vmatpush1.msra.mxu0 0.0
    %99 = vmatprep.subr.mxu0 0.0
    %100 = vmatpush1.msra.mxu0 0.0
    %101 = vmatprep.subr.mxu0 0.0
    %102 = vmatpush1.msra.mxu0 0.0
    %103 = vmatprep.subr.mxu0 0.0
    %104 = vmatpush1.msra.mxu0 0.0
    %105 = vmatprep.subr.mxu0 0.0
    %106 = vmatpush1.msra.mxu0 0.0
    %107 = vmatprep.subr.mxu0 0.0
    %108 = vmatpush1.msra.mxu0 0.0
    %109 = vmatprep.subr.mxu0 0.0
    %110 = vmatpush1.msra.mxu0 0.0
    %111 = vmatprep.subr.mxu0 0.0
    %112 = vmatpush1.msra.mxu0 0.0
    %113 = vmatprep.subr.mxu0 0.0
    %114 = vmatpush1.msra.mxu0 0.0
    %115 = vmatprep.subr.mxu0 0.0
    %116 = vmatpush1.msra.mxu0 0.0
    %117 = vmatprep.subr.mxu0 0.0
    %118 = vmatpush1.msra.mxu0 0.0
    %119 = vmatprep.mubr.f32.mxu0 0.0
    %120 = vmatmul.mubr.f32.gmra.mrb[0].mxu0 %v53
    %v121 = vpop.f32.mrb[0].mxu0
    %v122 = vadd.f32 %v50, %v121
    %v123 = vpop.f32.mrb[0].mxu0
    %124 = vdwg.mxu0
    %v125 = vmax.f32 %v122, 0.0
    %126 = vst [vmem:[#allocation7] sm:$0x1] %v125
    // Predicated region
    $region22: #{tpu_custom_call.1} parent=1 // pred_check
      _
    $region23: #{tpu_custom_call.1} parent=1 // pred_check_branch
      %128 = sbr.rel (0) target = $region25
    $region24: #{tpu_custom_call.1} parent=1 // pred_region
      %s130 = ssub.s32 16, 16
      %131 = vsyncadd [#allocation4], %s130
      %s133 = sshll.u32 [#allocation7], 4
      %s134 = int_to_ptr.vmem [resolvable:$true] %s133
      %136 = dma.vmem_to_hbm [thread:$0]  %s134, 16, %s3, [#allocation4]
    $region25: #{tpu_custom_call.1} parent=1 // pred_fallthru
      _
    // Predicated region
    $region26: #{tpu_custom_call.1} parent=1 // pred_check
      _
    $region27: #{tpu_custom_call.1} parent=1 // pred_check_branch
      %138 = sbr.rel (0) target = $region29
    $region28: #{tpu_custom_call.1} parent=1 // pred_region
      %139 = dma.done [#allocation4], 16
    $region29: #{tpu_custom_call.1} parent=1 // pred_fallthru
      _
    %140 = vsyncpa [#allocation3], 1
    %141 = vsyncpa [#allocation6], 1
    %142 = vsyncpa [#allocation4], 1

</llo_original>
